<compile_context>
chip_gen: v5e
topology: v5e:2x2
jax: 0.10.0
libtpu: 0.0.40
codegen_flags: <defaults>
</compile_context>

<pallas_src>
import jax
import jax.numpy as jnp
from jax import lax
from jax.experimental import pallas as pl
from jax.experimental.pallas import tpu as pltpu


def _mean_pool_kernel(x_ref, m_ref, inv_ref, o_ref):
    # x_ref:   (tb, ts, th)  activation tile (native dtype)
    # m_ref:   (tb, 1, ts)   mask tile, cast to x's dtype (0/1 exact)
    # inv_ref: (tb, 1)       f32, precomputed 1 / clamp(sum_s mask, 1e-9)
    # o_ref:   (tb, th)      f32 output tile, resident across the k axis
    k = pl.program_id(2)

    @pl.when(k == 0)
    def _init():
        o_ref[...] = jnp.zeros_like(o_ref)

    # (tb, 1, ts) x (tb, ts, th) -> (tb, 1, th): masked sum over S on the MXU.
    partial = lax.dot_general(
        m_ref[...],
        x_ref[...],
        dimension_numbers=(((2,), (1,)), ((0,), (0,))),
        preferred_element_type=jnp.float32,
    )
    o_ref[...] += partial[:, 0, :]

    @pl.when(k == pl.num_programs(2) - 1)
    def _finalize():
        o_ref[...] *= inv_ref[...]


def _round_up(n, m):
    return ((n + m - 1) // m) * m


def _vmem_budget():
    """Return (x-tile byte budget, vmem_limit_bytes) for this TPU generation."""
    try:
        cap = int(pltpu.get_tpu_info().vmem_capacity_bytes)
    except Exception:
        cap = 64 * 1024 * 1024  # conservative fallback: v7x per-core VMEM
    if cap >= 128 * 1024 * 1024:                     # v5e / v6e
        return 16 * 1024 * 1024, 64 * 1024 * 1024
    return 10 * 1024 * 1024, 48 * 1024 * 1024        # v7x / unknown


def mean_pooling(last_hidden_state: jax.Array, attention_mask: jax.Array) -> jax.Array:
    B, S, H = last_hidden_state.shape
    assert attention_mask.shape == (B, S)

    x = last_hidden_state
    itemsize = jnp.dtype(x.dtype).itemsize
    budget, vmem_limit = _vmem_budget()

    # --- batch tile -----------------------------------------------------------
    # A block dim equal to the full array dim is always legal, so avoid padding
    # (and the extra HBM traffic it costs) unless B is large and 8-divisible.
    if (B <= 8) or (B % 8 != 0 and B <= 64):
        tb, B_pad = B, B
    else:
        tb, B_pad = 8, _round_up(B, 8)

    # --- hidden tile (keep tb*th modest so the resident f32 block avoids spills)
    max_acc_elems = 16 * 1024
    th_cap = max(128, ((max_acc_elems // tb) // 128) * 128)
    if H <= th_cap:
        th, H_pad = H, H
    else:
        th = 0
        d = th_cap
        while d >= 128:
            if H % d == 0:           # exact multiple-of-128 divisor: no padding
                th = d
                break
            d -= 128
        if th:
            H_pad = H
        else:
            th = min(512, th_cap)
            H_pad = _round_up(H, th)

    # --- v7x dual-TensorCore: ensure >= 2 parallel grid tiles when H allows ---
    if (B_pad // tb) == 1 and (H_pad // th) == 1 and th % 256 == 0:
        th //= 2

    # --- sequence (reduction) tile within the per-step DMA byte budget --------
    row_bytes = max(1, tb * th * itemsize)
    elems = max(8, budget // row_bytes)
    if S <= elems:
        ts, S_pad = S, S                       # single k-step; full dim is legal
    else:
        ts = max(128, (elems // 128) * 128)    # 128-aligned contraction dim
        S_pad = _round_up(S, ts)

    # --- zero-pad awkward shapes (mask == 0 on the padding => free) -----------
    m = attention_mask.astype(x.dtype)
    if (B_pad, S_pad, H_pad) != (B, S, H):
        x = jnp.pad(x, ((0, B_pad - B), (0, S_pad - S), (0, H_pad - H)))
        m = jnp.pad(m, ((0, B_pad - B), (0, S_pad - S)))

    # Reciprocal denominator precomputed outside the kernel: (B_pad, 1) f32.
    inv = 1.0 / jnp.maximum(
        jnp.sum(m.astype(jnp.float32), axis=1, keepdims=True), 1e-9)

    # Mask laid out (B, 1, S): lane-dense, contiguous in HBM, and the right
    # operand shape for the MXU contraction over S.
    m3 = m.reshape(B_pad, 1, S_pad)

    grid = (B_pad // tb, H_pad // th, S_pad // ts)

    out = pl.pallas_call(
        _mean_pool_kernel,
        out_shape=jax.ShapeDtypeStruct((B_pad, H_pad), jnp.float32),
        grid_spec=pltpu.PrefetchScalarGridSpec(
            num_scalar_prefetch=0,
            grid=grid,
            in_specs=[
                pl.BlockSpec((tb, ts, th), lambda b, j, k: (b, k, j)),
                pl.BlockSpec((tb, 1, ts), lambda b, j, k: (b, 0, k)),
                pl.BlockSpec((tb, 1), lambda b, j, k: (b, 0)),
            ],
            out_specs=pl.BlockSpec((tb, th), lambda b, j, k: (b, j)),
        ),
        compiler_params=pltpu.CompilerParams(
            dimension_semantics=("parallel", "parallel", "arbitrary"),
            vmem_limit_bytes=vmem_limit,
        ),
    )(x, m3, inv)

    if (B_pad, H_pad) != (B, H):
        out = out[:B, :H]
    return out


def _reference(last_hidden_state, attention_mask):
    m = attention_mask[:, :, None].astype(jnp.float32)
    xf = last_hidden_state.astype(jnp.float32)
    sum_emb = jnp.sum(xf * m, axis=1)
    sum_mask = jnp.maximum(jnp.sum(m, axis=1), 1e-9)
    return sum_emb / sum_mask


if __name__ == "__main__":
    key = jax.random.PRNGKey(0)
    k1, k2 = jax.random.split(key)

    B, S, H = 2, 8, 32
    last_hidden_state = jax.random.normal(k1, (B, S, H), dtype=jnp.float32)
    # binary attention mask (some padding positions are zero)
    attention_mask = (jax.random.uniform(k2, (B, S)) > 0.3).astype(jnp.float32)

    out = mean_pooling(last_hidden_state, attention_mask)
    jax.block_until_ready(out)

    ref = _reference(last_hidden_state, attention_mask)
    assert out.shape == (B, H)
    assert jnp.allclose(out, ref, atol=1e-5, rtol=1e-5), "mismatch vs reference"

    print("KERNEL_OK")
</pallas_src>

<mosaic_0001>
module attributes {stable_mosaic.version = 11 : i64} {
  func.func @_mean_pool_kernel(%arg0: i32, %arg1: i32, %arg2: i32, %arg3: memref<2x8x32xf32, #tpu.memory_space<vmem>>, %arg4: memref<2x1x8xf32, #tpu.memory_space<vmem>>, %arg5: memref<2x1xf32, #tpu.memory_space<vmem>>, %arg6: memref<2x32xf32, #tpu.memory_space<vmem>>) attributes {dimension_semantics = [#tpu.dimension_semantics<parallel>, #tpu.dimension_semantics<parallel>, #tpu.dimension_semantics<arbitrary>], iteration_bounds = array<i64: 1, 1, 1>, scalar_prefetch = 0 : i64, scratch_operands = 0 : i64, tpu.core_type = #tpu.core_type<tc>, window_params = [{transform_indices = @transform_0, window_bounds = array<i64: 2, 8, 32>}, {transform_indices = @transform_1, window_bounds = array<i64: 2, 1, 8>}, {transform_indices = @transform_2, window_bounds = array<i64: 2, 1>}, {transform_indices = @transform_3, window_bounds = array<i64: 2, 32>}]} {
    %c0_i32 = arith.constant 0 : i32
    %0 = arith.cmpi eq, %arg2, %c0_i32 : i32
    %1 = arith.extui %0 : i1 to i32
    %c0_i32_0 = arith.constant 0 : i32
    %2 = arith.cmpi ne, %1, %c0_i32_0 : i32
    scf.if %2 {
      %cst_12 = arith.constant 0.000000e+00 : f32
      %13 = vector.broadcast %cst_12 : f32 to vector<2x32xf32>
      %c0_13 = arith.constant 0 : index
      %c0_14 = arith.constant 0 : index
      %14 = vector.load %arg6[%c0_13, %c0_14] : memref<2x32xf32, #tpu.memory_space<vmem>>, vector<2x32xf32>
      tpu.vector_store %arg6[%c0_13, %c0_14], %13 {strides = array<i32>} : memref<2x32xf32, #tpu.memory_space<vmem>>, vector<2x32xf32>,
    } else {
    }
    %c0 = arith.constant 0 : index
    %c0_1 = arith.constant 0 : index
    %c0_2 = arith.constant 0 : index
    %3 = vector.load %arg4[%c0, %c0_1, %c0_2] : memref<2x1x8xf32, #tpu.memory_space<vmem>>, vector<2x1x8xf32>
    %c0_3 = arith.constant 0 : index
    %c0_4 = arith.constant 0 : index
    %c0_5 = arith.constant 0 : index
    %4 = vector.load %arg3[%c0_3, %c0_4, %c0_5] : memref<2x8x32xf32, #tpu.memory_space<vmem>>, vector<2x8x32xf32>
    %cst = arith.constant dense<0.000000e+00> : vector<2x1x32xf32>
    %5 = tpu.matmul %3, %4, %cst {dimension_numbers = #tpu.dot_dimension_numbers<[2], [1], [1], [2], [0, 0, 0, 1, 1, 2], [0], [0]>} : vector<2x1x8xf32>, vector<2x8x32xf32>, vector<2x1x32xf32> -> vector<2x1x32xf32>
    %c0_6 = arith.constant 0 : index
    %c0_7 = arith.constant 0 : index
    %6 = vector.load %arg6[%c0_6, %c0_7] : memref<2x32xf32, #tpu.memory_space<vmem>>, vector<2x32xf32>
    %7 = vector.shape_cast %5 : vector<2x1x32xf32> to vector<2x32xf32>
    %8 = arith.addf %6, %7 : vector<2x32xf32>
    %c0_8 = arith.constant 0 : index
    %c0_9 = arith.constant 0 : index
    %9 = vector.load %arg6[%c0_8, %c0_9] : memref<2x32xf32, #tpu.memory_space<vmem>>, vector<2x32xf32>
    tpu.vector_store %arg6[%c0_8, %c0_9], %8 {strides = array<i32>} : memref<2x32xf32, #tpu.memory_space<vmem>>, vector<2x32xf32>,
    %c0_i32_10 = arith.constant 0 : i32
    %10 = arith.cmpi eq, %arg2, %c0_i32_10 : i32
    %11 = arith.extui %10 : i1 to i32
    %c0_i32_11 = arith.constant 0 : i32
    %12 = arith.cmpi ne, %11, %c0_i32_11 : i32
    scf.if %12 {
      %c0_12 = arith.constant 0 : index
      %c0_13 = arith.constant 0 : index
      %13 = vector.load %arg6[%c0_12, %c0_13] : memref<2x32xf32, #tpu.memory_space<vmem>>, vector<2x32xf32>
      %c0_14 = arith.constant 0 : index
      %c0_15 = arith.constant 0 : index
      %14 = vector.load %arg5[%c0_14, %c0_15] : memref<2x1xf32, #tpu.memory_space<vmem>>, vector<2x1xf32>
      %15 = vector.broadcast %14 : vector<2x1xf32> to vector<2x32xf32>
      %16 = arith.mulf %13, %15 : vector<2x32xf32>
      %c0_16 = arith.constant 0 : index
      %c0_17 = arith.constant 0 : index
      %17 = vector.load %arg6[%c0_16, %c0_17] : memref<2x32xf32, #tpu.memory_space<vmem>>, vector<2x32xf32>
      tpu.vector_store %arg6[%c0_16, %c0_17], %16 {strides = array<i32>} : memref<2x32xf32, #tpu.memory_space<vmem>>, vector<2x32xf32>,
    } else {
    }
    return
  }
  func.func @transform_0(%arg0: i32, %arg1: i32, %arg2: i32) -> (i32, i32, i32) {
    %c0_i32 = arith.constant 0 : i32
    return %arg0, %arg2, %arg1 : i32, i32, i32
  }
  func.func @transform_1(%arg0: i32, %arg1: i32, %arg2: i32) -> (i32, i32, i32) {
    %c0_i32 = arith.constant 0 : i32
    %c0_i32_0 = arith.constant 0 : i32
    return %arg0, %c0_i32, %arg2 : i32, i32, i32
  }
  func.func @transform_2(%arg0: i32, %arg1: i32, %arg2: i32) -> (i32, i32) {
    %c0_i32 = arith.constant 0 : i32
    %c0_i32_0 = arith.constant 0 : i32
    return %arg0, %c0_i32 : i32, i32
  }
  func.func @transform_3(%arg0: i32, %arg1: i32, %arg2: i32) -> (i32, i32) {
    %c0_i32 = arith.constant 0 : i32
    return %arg0, %arg1 : i32, i32
  }
}

</mosaic_0001>

<llo_original>
// kernel: tpu_custom_call.1
$region0: #{tpu_custom_call.1}
  #allocation0 [shape = 'u32[]', space=smem, size = 0x4, offset = 0x4, fixed_abs, tag = 'smem constant byte address 0x4 - core index']
  #allocation1 [shape = 'u32[72,128]{1,0:T(1,128)}', space=vmem, size = 0x9000, scoped, tag = 'internal scratch']
  %s0 = inlined_call_operand.hbm [shape: f32[2,8,32], index: 0, kind: input, shape index: {}]
  %s1 = inlined_call_operand.vmem [shape: f32[2,1,8], index: 1, kind: input, shape index: {}]
  %s2 = inlined_call_operand.vmem [shape: f32[2,1], index: 2, kind: input, shape index: {}]
  %s3 = inlined_call_operand.hbm [shape: f32[2,32], index: 3, kind: output, shape index: {}]
  %s4 = sld [smem:[#allocation0]]
  $region34: #{tpu_custom_call.1} parent=0
    _
  %s6 = ssub.s32 1, %s4
  %s7 = scalar_select 0, %s6, %s4
  $region1: #{tpu_custom_call.1} parent=0
    #allocation2 [shape = 'u8[8192]{0}', space=vmem, size = 0x2000, scoped, tag = 'input window, operand 0, single buffered']
    #allocation3 [shape = 's32[1]{0}', space=sflag, size = 0x4, scoped, tag = 'scoped memory for tpu_custom_call.1']
    #allocation4 [shape = 's32[1]{0}', space=sflag, size = 0x4, scoped, tag = 'scoped memory for tpu_custom_call.1']
    #allocation5 [shape = 'u8[1024]{0}', space=vmem, size = 0x400, scoped, tag = 'output window, operand 0, single buffered']
    %8 = vsyncpa [#allocation3], 0
    %9 = vsyncpa [#allocation4], 0
    // Predicated region
    $region2: #{tpu_custom_call.1} parent=1 // pred_check
      _
    $region3: #{tpu_custom_call.1} parent=1 // pred_check_branch
      %11 = sbr.rel (0) target = $region5
    $region4: #{tpu_custom_call.1} parent=1 // pred_region
      %13 = vsyncadd [#allocation3], 0
      %s14 = sshll.u32 %s0, 4
      %s15 = int_to_ptr.hbm [resolvable:$true] %s14
      %s16 = sshll.u32 [#allocation2], 4
      %s17 = int_to_ptr.vmem [resolvable:$true] %s16
      %22 = dma.hbm_to_vmem [thread:$0]  %s15, 256, %s17, [#allocation3], 128, 128, 8
    $region5: #{tpu_custom_call.1} parent=1 // pred_fallthru
      _
    // Predicated region
    $region6: #{tpu_custom_call.1} parent=1 // pred_check
      _
    $region7: #{tpu_custom_call.1} parent=1 // pred_check_branch
      %24 = sbr.rel (0) target = $region9
    $region8: #{tpu_custom_call.1} parent=1 // pred_region
      _
    $region9: #{tpu_custom_call.1} parent=1 // pred_fallthru
      _
    // Predicated region
    $region10: #{tpu_custom_call.1} parent=1 // pred_check
      _
    $region11: #{tpu_custom_call.1} parent=1 // pred_check_branch
      %26 = sbr.rel (0) target = $region13
    $region12: #{tpu_custom_call.1} parent=1 // pred_region
      _
    $region13: #{tpu_custom_call.1} parent=1 // pred_fallthru
      _
    // Predicated region
    $region14: #{tpu_custom_call.1} parent=1 // pred_check
      _
    $region15: #{tpu_custom_call.1} parent=1 // pred_check_branch
      %28 = sbr.rel (0) target = $region17
    $region16: #{tpu_custom_call.1} parent=1 // pred_region
      %30 = dma.done [#allocation3], 256
    $region17: #{tpu_custom_call.1} parent=1 // pred_fallthru
      _
    %p31 = scmp.eq.s32.totalorder 0, 0
    // Predicated region
    $region18: #{tpu_custom_call.1} parent=1 // pred_check
      %p32 = pneg %p31
    $region19: #{tpu_custom_call.1} parent=1 // pred_check_branch
      %34 = sbr.rel (%p32) target = $region21
    $region20: #{tpu_custom_call.1} parent=1 // pred_region
      %vm35 = vcmask 254976
      %36 = vst.msk [vmem:[#allocation5] sm:$0x3] %vm35, 0.0
    $region21: #{tpu_custom_call.1} parent=1 // pred_fallthru
      _
    %v37 = vld [vmem:[%s1] sm:$0x1]
    %v38 = vld [vmem:[%s1 + $0x1] sm:$0x1]
    %v39 = vld [vmem:[#allocation2] sm:$0xff]
    %v40 = vld [vmem:[#allocation2 + $0x8] sm:$0xff]
    %vm41 = vcmask 64512
    %v43 = vsel %vm41, %v37, 0
    %45 = vmatpush.msra.mxu0 0.0
    %46 = vmatpush.msra.mxu0 0.0
    %47 = vmatpush.msra.mxu0 0.0
    %48 = vmatpush.msra.mxu0 0.0
    %49 = vmatpush.msra.mxu0 0.0
    %50 = vmatpush.msra.mxu0 0.0
    %51 = vmatpush.msra.mxu0 0.0
    %52 = vmatpush.msra.mxu0 0.0
    %53 = vmatpush.msra.mxu0 0.0
    %54 = vmatpush.msra.mxu0 0.0
    %55 = vmatpush.msra.mxu0 0.0
    %56 = vmatpush.msra.mxu0 0.0
    %57 = vmatpush.msra.mxu0 0.0
    %58 = vmatpush.msra.mxu0 0.0
    %59 = vmatpush.msra.mxu0 0.0
    %60 = vmatpush.msra.mxu0 %v39
    %61 = vmatmul.f32.gmra.mxu0 %v43
    %v62 = vpop.f32.mrf.mxu0
    %v63 = vadd.f32 0.0, %v62
    %64 = vdwg.mxu0
    %v66 = vsel %vm41, %v38, 0
    %68 = vmatpush.msra.mxu0 0.0
    %69 = vmatpush.msra.mxu0 0.0
    %70 = vmatpush.msra.mxu0 0.0
    %71 = vmatpush.msra.mxu0 0.0
    %72 = vmatpush.msra.mxu0 0.0
    %73 = vmatpush.msra.mxu0 0.0
    %74 = vmatpush.msra.mxu0 0.0
    %75 = vmatpush.msra.mxu0 0.0
    %76 = vmatpush.msra.mxu0 0.0
    %77 = vmatpush.msra.mxu0 0.0
    %78 = vmatpush.msra.mxu0 0.0
    %79 = vmatpush.msra.mxu0 0.0
    %80 = vmatpush.msra.mxu0 0.0
    %81 = vmatpush.msra.mxu0 0.0
    %82 = vmatpush.msra.mxu0 0.0
    %83 = vmatpush.msra.mxu0 %v40
    %84 = vmatmul.f32.gmra.mxu0 %v66
    %v85 = vpop.f32.mrf.mxu0
    %v86 = vadd.f32 0.0, %v85
    %87 = vdwg.mxu0
    %v88 = vld [vmem:[#allocation5] sm:$0x3]
    %v91 = vrot.slane %v86, 7
    %vm92 = vcmask 1041409
    %v93 = vsel %vm92, %v91, %v63
    %v95 = vadd.f32 %v88, %v93
    %vm96 = vcmask 254976
    %97 = vst.msk [vmem:[#allocation5] sm:$0x3] %vm96, %v95
    // Predicated region
    $region22: #{tpu_custom_call.1} parent=1 // pred_check
      %p98 = pneg %p31
    $region23: #{tpu_custom_call.1} parent=1 // pred_check_branch
      %100 = sbr.rel (%p98) target = $region25
    $region24: #{tpu_custom_call.1} parent=1 // pred_region
      %v101 = vld [vmem:[#allocation5] sm:$0x3]
      %v102 = vld [vmem:[%s2] sm:$0x3]
      %104 = vset.pattern.permute.xlu0 0
      %105 = vperm.xlu0 %104, %v102
      %v106 = vpop.permute.xlu0 %105
      %v108 = vmul.f32 %v101, %v106
      %109 = vst.msk [vmem:[#allocation5] sm:$0x3] %vm96, %v108
    $region25: #{tpu_custom_call.1} parent=1 // pred_fallthru
      _
    // Predicated region
    $region26: #{tpu_custom_call.1} parent=1 // pred_check
      _
    $region27: #{tpu_custom_call.1} parent=1 // pred_check_branch
      %111 = sbr.rel (0) target = $region29
    $region28: #{tpu_custom_call.1} parent=1 // pred_region
      %113 = vsyncadd [#allocation4], 0
      %s115 = sshll.u32 [#allocation5], 4
      %s116 = int_to_ptr.vmem [resolvable:$true] %s115
      %s117 = sshll.u32 %s3, 4
      %s118 = int_to_ptr.hbm [resolvable:$true] %s117
      %120 = dma.vmem_to_hbm [thread:$0]  %s116, 32, %s118, [#allocation4]
    $region29: #{tpu_custom_call.1} parent=1 // pred_fallthru
      _
    // Predicated region
    $region30: #{tpu_custom_call.1} parent=1 // pred_check
      _
    $region31: #{tpu_custom_call.1} parent=1 // pred_check_branch
      %122 = sbr.rel (0) target = $region33
    $region32: #{tpu_custom_call.1} parent=1 // pred_region
      %124 = dma.done [#allocation4], 32
    $region33: #{tpu_custom_call.1} parent=1 // pred_fallthru
      _
    %125 = vsyncpa [#allocation3], 1
    %126 = vsyncpa [#allocation4], 1

</llo_original>
